<compile_context>
chip_gen: v5e
topology: v5e:2x2
jax: 0.10.0
libtpu: 0.0.40
codegen_flags: <defaults>
</compile_context>

<pallas_src>
import jax
import jax.numpy as jnp
from jax.experimental import pallas as pl
from jax.experimental.pallas import tpu as pltpu

# ----------------------------- model config ---------------------------------
B = 2             # batch
S = 10            # source sequence length
H = 32            # hid_dim
NH = 4            # n_heads
HD = H // NH      # head_dim
PF = 64           # pf_dim
LN_EPS = 1e-5

BS = B * S        # 20 flattened (batch, seq) rows
C = NH * BS       # 80 score columns: head-major blocks of BS keys

# ---- weight-slab row offsets (all multiples of 8, columns start at 0) -------
R_WQKV = 0                     # (H, 3H)  packed Q|K|V weights (Q pre-scaled)
R_WO = H                       # (H, H)   output projection
R_W1 = 2 * H                   # (H, PF)  FFN fc_1
R_W2 = 3 * H                   # (PF, H)  FFN fc_2
R_SEL = 3 * H + PF             # (C, BS)  row replicator  sel[c, j] = [j == c % BS]
R_HMV = R_SEL + C              # (C, H)   head selector   hm[c, e] = [e//HD == c//BS]
W_ROWS = R_HMV + C             # 320
W_COLS = 128

# ---- vector-slab rows --------------------------------------------------------
VR_BQKV, VR_BO, VR_B1, VR_B2 = 0, 1, 2, 3
VR_LN1G, VR_LN1B, VR_LN2G, VR_LN2B = 4, 5, 6, 7
VR_BIAS = 8                    # rows 8 : 8+BS hold the (BS, C) additive attention bias
V_ROWS = 32
V_COLS = 128


# ------------------------------ Pallas kernel --------------------------------
def encoder_layer_kernel(x_ref, w_ref, vec_ref, out_ref):
  """Fused encoder layer on flattened (B*S, H) activations, single grid step."""
  x = x_ref[...]                                          # (BS, H)

  # ---- static row-band slices of the two slabs (sublane/lane aligned) ----
  w_qkv = w_ref[R_WQKV:R_WQKV + H, 0:3 * H]               # (H, 3H)
  w_o = w_ref[R_WO:R_WO + H, 0:H]                         # (H, H)
  w1 = w_ref[R_W1:R_W1 + H, 0:PF]                         # (H, PF)
  w2 = w_ref[R_W2:R_W2 + PF, 0:H]                         # (PF, H)
  sel = w_ref[R_SEL:R_SEL + C, 0:BS]                      # (C, BS)
  hm_v = w_ref[R_HMV:R_HMV + C, 0:H]                      # (C, H)

  b_qkv = vec_ref[VR_BQKV:VR_BQKV + 1, 0:3 * H]           # (1, 3H)
  b_o = vec_ref[VR_BO:VR_BO + 1, 0:H]
  b1 = vec_ref[VR_B1:VR_B1 + 1, 0:PF]
  b2 = vec_ref[VR_B2:VR_B2 + 1, 0:H]
  ln1_g = vec_ref[VR_LN1G:VR_LN1G + 1, 0:H]
  ln1_b = vec_ref[VR_LN1B:VR_LN1B + 1, 0:H]
  ln2_g = vec_ref[VR_LN2G:VR_LN2G + 1, 0:H]
  ln2_b = vec_ref[VR_LN2B:VR_LN2B + 1, 0:H]
  attn_bias = vec_ref[VR_BIAS:VR_BIAS + BS, 0:C]          # (BS, C)

  def layer_norm(y, g, bias):
    mu = jnp.mean(y, axis=-1, keepdims=True)
    var = jnp.mean(jnp.square(y - mu), axis=-1, keepdims=True)
    return (y - mu) * jax.lax.rsqrt(var + LN_EPS) * g + bias

  # ---- QKV projection: one lane-dense (BS,H)@(H,3H) matmul ----
  qkv = jnp.dot(x, w_qkv, preferred_element_type=jnp.float32) + b_qkv
  q = qkv[:, 0:H]                    # (BS, H), already scaled by 1/sqrt(HD)
  k = qkv[:, H:2 * H]                # (BS, H)
  v = qkv[:, 2 * H:3 * H]            # (BS, H)

  # ---- lane-packed block-diagonal attention (all heads & batches at once) ----
  # Row c = h*BS + j of k_bd/v_bd holds key/value j restricted to head h's channels.
  k_bd = jnp.dot(sel, k, preferred_element_type=jnp.float32) * hm_v      # (C, H)
  v_bd = jnp.dot(sel, v, preferred_element_type=jnp.float32) * hm_v      # (C, H)

  # scores[r, h*BS + j] = Q_h(r) . K_h(j) / sqrt(HD);  additive bias = -1e10 for
  # cross-batch or padded keys (precomputed at trace time).
  scores = jax.lax.dot_general(
      q, k_bd, (((1,), (1,)), ((), ())),
      preferred_element_type=jnp.float32) + attn_bias                     # (BS, C)
  # Per-row shift is the same constant for every head block -> softmax unchanged.
  scores = scores - jnp.max(scores, axis=-1, keepdims=True)
  p = jnp.exp(scores)                # masked columns underflow to exactly 0

  # Un-normalized context and per-head denominators (broadcast per channel);
  # exact divide (no approximate reciprocal).
  ctx_un = jnp.dot(p, v_bd, preferred_element_type=jnp.float32)           # (BS, H)
  denom = jnp.dot(p, hm_v, preferred_element_type=jnp.float32)            # (BS, H)
  ctx = ctx_un / denom               # head-concatenated layout, ready for W_o

  # ---- output projection, residual + LN, FFN, residual + LN ----
  sa = jnp.dot(ctx, w_o, preferred_element_type=jnp.float32) + b_o
  x1 = layer_norm(x + sa, ln1_g, ln1_b)

  hid = jnp.maximum(jnp.dot(x1, w1, preferred_element_type=jnp.float32) + b1, 0.0)
  ff = jnp.dot(hid, w2, preferred_element_type=jnp.float32) + b2
  out_ref[...] = layer_norm(x1 + ff, ln2_g, ln2_b)


# --------------------------- pallas_call wrapper ------------------------------
def _full_spec(shape):
  nd = len(shape)
  return pl.BlockSpec(shape, lambda i, _nd=nd: (0,) * _nd)


def encoder_layer_forward(params, src, src_mask):
  """src: (B, S, H) float32; src_mask: (B, S) float {0,1} key-padding mask."""
  b, s, h = src.shape
  assert (b, s, h) == (B, S, H)
  inv_scale = 1.0 / jnp.sqrt(jnp.float32(HD))

  # ---- pack Q/K/V into one (H, 3H) matrix; fold 1/sqrt(HD) into Q ----
  w_qkv = jnp.concatenate(
      [params['wq'] * inv_scale, params['wk'], params['wv']], axis=1)     # (H, 3H)
  b_qkv = jnp.concatenate(
      [params['bq'] * inv_scale, params['bk'], params['bv']], axis=1)     # (1, 3H)

  # ---- structural constants for the lane-packed attention ----
  col = jnp.arange(C)
  col_head = col // BS                                   # head of score column c
  col_key = col % BS                                     # flattened key row of column c
  sel = (col_key[:, None] == jnp.arange(BS)[None, :]).astype(jnp.float32)      # (C, BS)
  hm_v = (col_head[:, None] == (jnp.arange(H) // HD)[None, :]).astype(jnp.float32)  # (C, H)

  # ---- additive attention bias: 0 for same-batch valid keys, -1e10 otherwise ----
  row_batch = jnp.arange(BS) // S
  key_valid = src_mask.reshape(BS) > 0.5
  ok = (row_batch[:, None] == row_batch[None, :]) & key_valid[None, :]
  attn_bias = jnp.tile(
      jnp.where(ok, 0.0, -1e10).astype(jnp.float32), (1, NH))             # (BS, C)

  # ---- pack everything into three DMA slabs ----
  w_slab = jnp.zeros((W_ROWS, W_COLS), jnp.float32)
  w_slab = w_slab.at[R_WQKV:R_WQKV + H, 0:3 * H].set(w_qkv)
  w_slab = w_slab.at[R_WO:R_WO + H, 0:H].set(params['wo'])
  w_slab = w_slab.at[R_W1:R_W1 + H, 0:PF].set(params['ff_w1'])
  w_slab = w_slab.at[R_W2:R_W2 + PF, 0:H].set(params['ff_w2'])
  w_slab = w_slab.at[R_SEL:R_SEL + C, 0:BS].set(sel)
  w_slab = w_slab.at[R_HMV:R_HMV + C, 0:H].set(hm_v)

  vec_slab = jnp.zeros((V_ROWS, V_COLS), jnp.float32)
  vec_slab = vec_slab.at[VR_BQKV, 0:3 * H].set(b_qkv[0])
  vec_slab = vec_slab.at[VR_BO, 0:H].set(params['bo'][0])
  vec_slab = vec_slab.at[VR_B1, 0:PF].set(params['ff_b1'][0])
  vec_slab = vec_slab.at[VR_B2, 0:H].set(params['ff_b2'][0])
  vec_slab = vec_slab.at[VR_LN1G, 0:H].set(params['ln1_g'][0])
  vec_slab = vec_slab.at[VR_LN1B, 0:H].set(params['ln1_b'][0])
  vec_slab = vec_slab.at[VR_LN2G, 0:H].set(params['ln2_g'][0])
  vec_slab = vec_slab.at[VR_LN2B, 0:H].set(params['ln2_b'][0])
  vec_slab = vec_slab.at[VR_BIAS:VR_BIAS + BS, 0:C].set(attn_bias)

  x2d = src.reshape(BS, H)

  flops = 2 * (BS * H * 3 * H          # QKV projection
               + 2 * C * BS * H        # sel replication of K and V
               + BS * H * C            # scores
               + 2 * BS * C * H        # context numerator + denominator
               + BS * H * H            # output projection
               + 2 * BS * H * PF)      # FFN
  cost = pl.CostEstimate(
      flops=int(flops),
      transcendentals=int(BS * C),
      bytes_accessed=int(4 * (x2d.size + w_slab.size + vec_slab.size + BS * H)))

  out2d = pl.pallas_call(
      encoder_layer_kernel,
      out_shape=jax.ShapeDtypeStruct((BS, H), jnp.float32),
      grid=(1,),
      in_specs=[_full_spec((BS, H)),
                _full_spec((W_ROWS, W_COLS)),
                _full_spec((V_ROWS, V_COLS))],
      out_specs=_full_spec((BS, H)),
      compiler_params=pltpu.CompilerParams(
          dimension_semantics=("arbitrary",)),
      cost_estimate=cost,
  )(x2d, w_slab, vec_slab)
  return out2d.reshape(b, s, h)


# ----------------------- pure-JAX reference (for checking) -------------------
def _ref_ln(x, g, b):
  mu = jnp.mean(x, axis=-1, keepdims=True)
  var = jnp.mean(jnp.square(x - mu), axis=-1, keepdims=True)
  return (x - mu) * jax.lax.rsqrt(var + LN_EPS) * g + b


def reference_forward(params, src, src_mask):
  b, s, h = src.shape
  q = src @ params['wq'] + params['bq']
  k = src @ params['wk'] + params['bk']
  v = src @ params['wv'] + params['bv']
  q = q.reshape(b, s, NH, HD).transpose(0, 2, 1, 3)
  k = k.reshape(b, s, NH, HD).transpose(0, 2, 1, 3)
  v = v.reshape(b, s, NH, HD).transpose(0, 2, 1, 3)
  energy = jnp.einsum('bhqd,bhkd->bhqk', q, k) / jnp.sqrt(jnp.float32(HD))
  energy = jnp.where(src_mask[:, None, None, :] == 0,
                     jnp.float32(-1e10), energy)
  attn = jax.nn.softmax(energy, axis=-1)
  x = jnp.einsum('bhqk,bhkd->bhqd', attn, v)
  x = x.transpose(0, 2, 1, 3).reshape(b, s, h)
  sa = x @ params['wo'] + params['bo']
  x1 = _ref_ln(src + sa, params['ln1_g'], params['ln1_b'])
  ff = (jnp.maximum(x1 @ params['ff_w1'] + params['ff_b1'], 0.0)
        @ params['ff_w2'] + params['ff_b2'])
  return _ref_ln(x1 + ff, params['ln2_g'], params['ln2_b'])


# ------------------------------- init ----------------------------------------
def init_params(key):
  def linear_init(k, fan_in, fan_out):
    k1, k2 = jax.random.split(k)
    bound = 1.0 / (fan_in ** 0.5)
    w = jax.random.uniform(k1, (fan_in, fan_out), jnp.float32, -bound, bound)
    bia = jax.random.uniform(k2, (1, fan_out), jnp.float32, -bound, bound)
    return w, bia

  ks = iter(jax.random.split(key, 12))
  p = {}
  for name in ('wq', 'wk', 'wv', 'wo'):
    w, bb = linear_init(next(ks), H, H)
    p[name] = w
    p['b' + name[1]] = bb
  p['ff_w1'], p['ff_b1'] = linear_init(next(ks), H, PF)
  p['ff_w2'], p['ff_b2'] = linear_init(next(ks), PF, H)
  for ln in ('ln1', 'ln2'):
    p[f'{ln}_g'] = 1.0 + 0.1 * jax.random.normal(next(ks), (1, H), jnp.float32)
    p[f'{ln}_b'] = 0.1 * jax.random.normal(next(ks), (1, H), jnp.float32)
  return p


# ------------------------------- main -----------------------------------------
if __name__ == "__main__":
  root = jax.random.PRNGKey(0)
  k_params, k_src = jax.random.split(root)

  params = init_params(k_params)
  src = jax.random.normal(k_src, (B, S, H), jnp.float32)

  # per-example source key-padding mask (B, S); second example has 3 pads.
  src_lens = jnp.array([S, S - 3], dtype=jnp.int32)
  src_mask = (jnp.arange(S)[None, :] < src_lens[:, None]).astype(jnp.float32)

  out = encoder_layer_forward(params, src, src_mask)
  out = jax.block_until_ready(out)

  ref = reference_forward(params, src, src_mask)

  assert out.shape == (B, S, H)
  max_err = float(jnp.max(jnp.abs(out - ref)))
  # tolerance covers MXU f32 matmul decomposition differences vs the XLA path
  assert jnp.allclose(out, ref, atol=3e-3, rtol=3e-3), max_err

  print("KERNEL_OK")
</pallas_src>

<mosaic_0001>
module attributes {stable_mosaic.version = 11 : i64} {
  func.func @encoder_layer_kernel(%arg0: i32, %arg1: memref<20x32xf32, #tpu.memory_space<vmem>>, %arg2: memref<320x128xf32, #tpu.memory_space<vmem>>, %arg3: memref<32x128xf32, #tpu.memory_space<vmem>>, %arg4: memref<20x32xf32, #tpu.memory_space<vmem>>) attributes {dimension_semantics = [#tpu.dimension_semantics<arbitrary>], iteration_bounds = array<i64: 1>, scalar_prefetch = 0 : i64, scratch_operands = 0 : i64, tpu.core_type = #tpu.core_type<tc>, window_params = [{pipeline_mode = #tpu.pipeline_mode<synchronous>, transform_indices = @transform_0, window_bounds = array<i64: 20, 32>}, {pipeline_mode = #tpu.pipeline_mode<synchronous>, transform_indices = @transform_1, window_bounds = array<i64: 320, 128>}, {pipeline_mode = #tpu.pipeline_mode<synchronous>, transform_indices = @transform_2, window_bounds = array<i64: 32, 128>}, {pipeline_mode = #tpu.pipeline_mode<synchronous>, transform_indices = @transform_3, window_bounds = array<i64: 20, 32>}]} {
    %c0 = arith.constant 0 : index
    %c0_0 = arith.constant 0 : index
    %0 = vector.load %arg1[%c0, %c0_0] : memref<20x32xf32, #tpu.memory_space<vmem>>, vector<20x32xf32>
    %c0_1 = arith.constant 0 : index
    %c0_2 = arith.constant 0 : index
    %1 = vector.load %arg2[%c0_1, %c0_2] : memref<320x128xf32, #tpu.memory_space<vmem>>, vector<32x96xf32>
    %c32 = arith.constant 32 : index
    %c0_3 = arith.constant 0 : index
    %2 = vector.load %arg2[%c32, %c0_3] : memref<320x128xf32, #tpu.memory_space<vmem>>, vector<32x32xf32>
    %c64 = arith.constant 64 : index
    %c0_4 = arith.constant 0 : index
    %3 = vector.load %arg2[%c64, %c0_4] : memref<320x128xf32, #tpu.memory_space<vmem>>, vector<32x64xf32>
    %c96 = arith.constant 96 : index
    %c0_5 = arith.constant 0 : index
    %4 = vector.load %arg2[%c96, %c0_5] : memref<320x128xf32, #tpu.memory_space<vmem>>, vector<64x32xf32>
    %c160 = arith.constant 160 : index
    %c0_6 = arith.constant 0 : index
    %5 = vector.load %arg2[%c160, %c0_6] : memref<320x128xf32, #tpu.memory_space<vmem>>, vector<80x20xf32>
    %c240 = arith.constant 240 : index
    %c0_7 = arith.constant 0 : index
    %6 = vector.load %arg2[%c240, %c0_7] : memref<320x128xf32, #tpu.memory_space<vmem>>, vector<80x32xf32>
    %c0_8 = arith.constant 0 : index
    %c0_9 = arith.constant 0 : index
    %7 = vector.load %arg3[%c0_8, %c0_9] : memref<32x128xf32, #tpu.memory_space<vmem>>, vector<1x96xf32>
    %c1 = arith.constant 1 : index
    %c0_10 = arith.constant 0 : index
    %8 = vector.load %arg3[%c1, %c0_10] : memref<32x128xf32, #tpu.memory_space<vmem>>, vector<1x32xf32>
    %c2 = arith.constant 2 : index
    %c0_11 = arith.constant 0 : index
    %9 = vector.load %arg3[%c2, %c0_11] : memref<32x128xf32, #tpu.memory_space<vmem>>, vector<1x64xf32>
    %c3 = arith.constant 3 : index
    %c0_12 = arith.constant 0 : index
    %10 = vector.load %arg3[%c3, %c0_12] : memref<32x128xf32, #tpu.memory_space<vmem>>, vector<1x32xf32>
    %c4 = arith.constant 4 : index
    %c0_13 = arith.constant 0 : index
    %11 = vector.load %arg3[%c4, %c0_13] : memref<32x128xf32, #tpu.memory_space<vmem>>, vector<1x32xf32>
    %c5 = arith.constant 5 : index
    %c0_14 = arith.constant 0 : index
    %12 = vector.load %arg3[%c5, %c0_14] : memref<32x128xf32, #tpu.memory_space<vmem>>, vector<1x32xf32>
    %c6 = arith.constant 6 : index
    %c0_15 = arith.constant 0 : index
    %13 = vector.load %arg3[%c6, %c0_15] : memref<32x128xf32, #tpu.memory_space<vmem>>, vector<1x32xf32>
    %c7 = arith.constant 7 : index
    %c0_16 = arith.constant 0 : index
    %14 = vector.load %arg3[%c7, %c0_16] : memref<32x128xf32, #tpu.memory_space<vmem>>, vector<1x32xf32>
    %c8 = arith.constant 8 : index
    %c0_17 = arith.constant 0 : index
    %15 = vector.load %arg3[%c8, %c0_17] : memref<32x128xf32, #tpu.memory_space<vmem>>, vector<20x80xf32>
    %cst = arith.constant dense<0.000000e+00> : vector<20x96xf32>
    %16 = tpu.matmul %0, %1, %cst {dimension_numbers = #tpu.dot_dimension_numbers<[1], [0], [0], [1], [0, 0, 1, 1], [], []>} : vector<20x32xf32>, vector<32x96xf32>, vector<20x96xf32> -> vector<20x96xf32>
    %17 = vector.broadcast %7 : vector<1x96xf32> to vector<20x96xf32>
    %18 = arith.addf %16, %17 : vector<20x96xf32>
    %19 = vector.extract_strided_slice %18 {offsets = [0, 0], sizes = [20, 32], strides = [1, 1]} : vector<20x96xf32> to vector<20x32xf32>
    %20 = vector.extract_strided_slice %18 {offsets = [0, 32], sizes = [20, 32], strides = [1, 1]} : vector<20x96xf32> to vector<20x32xf32>
    %21 = vector.extract_strided_slice %18 {offsets = [0, 64], sizes = [20, 32], strides = [1, 1]} : vector<20x96xf32> to vector<20x32xf32>
    %cst_18 = arith.constant dense<0.000000e+00> : vector<80x32xf32>
    %22 = tpu.matmul %5, %20, %cst_18 {dimension_numbers = #tpu.dot_dimension_numbers<[1], [0], [0], [1], [0, 0, 1, 1], [], []>} : vector<80x20xf32>, vector<20x32xf32>, vector<80x32xf32> -> vector<80x32xf32>
    %23 = arith.mulf %22, %6 : vector<80x32xf32>
    %cst_19 = arith.constant dense<0.000000e+00> : vector<80x32xf32>
    %24 = tpu.matmul %5, %21, %cst_19 {dimension_numbers = #tpu.dot_dimension_numbers<[1], [0], [0], [1], [0, 0, 1, 1], [], []>} : vector<80x20xf32>, vector<20x32xf32>, vector<80x32xf32> -> vector<80x32xf32>
    %25 = arith.mulf %24, %6 : vector<80x32xf32>
    %cst_20 = arith.constant dense<0.000000e+00> : vector<20x80xf32>
    %26 = tpu.matmul %19, %23, %cst_20 {dimension_numbers = #tpu.dot_dimension_numbers<[1], [1], [0], [0], [0, 0, 1, 0], [], []>} : vector<20x32xf32>, vector<80x32xf32>, vector<20x80xf32> -> vector<20x80xf32>
    %27 = arith.addf %26, %15 : vector<20x80xf32>
    %cst_21 = arith.constant dense<0xFF800000> : vector<20xf32>
    %28 = vector.multi_reduction <maximumf>, %27, %cst_21 [1] : vector<20x80xf32> to vector<20xf32>
    %29 = vector.shape_cast %28 : vector<20xf32> to vector<20x1xf32>
    %30 = vector.broadcast %29 : vector<20x1xf32> to vector<20x80xf32>
    %31 = arith.subf %27, %30 : vector<20x80xf32>
    %32 = math.exp %31 : vector<20x80xf32>
    %cst_22 = arith.constant dense<0.000000e+00> : vector<20x32xf32>
    %33 = tpu.matmul %32, %25, %cst_22 {dimension_numbers = #tpu.dot_dimension_numbers<[1], [0], [0], [1], [0, 0, 1, 1], [], []>} : vector<20x80xf32>, vector<80x32xf32>, vector<20x32xf32> -> vector<20x32xf32>
    %cst_23 = arith.constant dense<0.000000e+00> : vector<20x32xf32>
    %34 = tpu.matmul %32, %6, %cst_23 {dimension_numbers = #tpu.dot_dimension_numbers<[1], [0], [0], [1], [0, 0, 1, 1], [], []>} : vector<20x80xf32>, vector<80x32xf32>, vector<20x32xf32> -> vector<20x32xf32>
    %35 = arith.divf %33, %34 : vector<20x32xf32>
    %cst_24 = arith.constant dense<0.000000e+00> : vector<20x32xf32>
    %36 = tpu.matmul %35, %2, %cst_24 {dimension_numbers = #tpu.dot_dimension_numbers<[1], [0], [0], [1], [0, 0, 1, 1], [], []>} : vector<20x32xf32>, vector<32x32xf32>, vector<20x32xf32> -> vector<20x32xf32>
    %37 = vector.broadcast %8 : vector<1x32xf32> to vector<20x32xf32>
    %38 = arith.addf %36, %37 : vector<20x32xf32>
    %39 = arith.addf %0, %38 : vector<20x32xf32>
    %cst_25 = arith.constant dense<0.000000e+00> : vector<20xf32>
    %40 = vector.multi_reduction <add>, %39, %cst_25 [1] : vector<20x32xf32> to vector<20xf32>
    %41 = vector.shape_cast %40 : vector<20xf32> to vector<20x1xf32>
    %cst_26 = arith.constant 3.200000e+01 : f32
    %42 = vector.broadcast %cst_26 : f32 to vector<20x1xf32>
    %43 = arith.divf %41, %42 : vector<20x1xf32>
    %44 = vector.broadcast %43 : vector<20x1xf32> to vector<20x32xf32>
    %45 = arith.subf %39, %44 : vector<20x32xf32>
    %46 = arith.mulf %45, %45 : vector<20x32xf32>
    %cst_27 = arith.constant dense<0.000000e+00> : vector<20xf32>
    %47 = vector.multi_reduction <add>, %46, %cst_27 [1] : vector<20x32xf32> to vector<20xf32>
    %48 = vector.shape_cast %47 : vector<20xf32> to vector<20x1xf32>
    %cst_28 = arith.constant 3.200000e+01 : f32
    %49 = vector.broadcast %cst_28 : f32 to vector<20x1xf32>
    %50 = arith.divf %48, %49 : vector<20x1xf32>
    %51 = vector.broadcast %43 : vector<20x1xf32> to vector<20x32xf32>
    %52 = arith.subf %39, %51 : vector<20x32xf32>
    %cst_29 = arith.constant 9.99999974E-6 : f32
    %53 = vector.broadcast %cst_29 : f32 to vector<20x1xf32>
    %54 = arith.addf %50, %53 : vector<20x1xf32>
    %55 = math.rsqrt %54 : vector<20x1xf32>
    %56 = vector.broadcast %55 : vector<20x1xf32> to vector<20x32xf32>
    %57 = arith.mulf %52, %56 : vector<20x32xf32>
    %58 = vector.broadcast %11 : vector<1x32xf32> to vector<20x32xf32>
    %59 = arith.mulf %57, %58 : vector<20x32xf32>
    %60 = vector.broadcast %12 : vector<1x32xf32> to vector<20x32xf32>
    %61 = arith.addf %59, %60 : vector<20x32xf32>
    %cst_30 = arith.constant dense<0.000000e+00> : vector<20x64xf32>
    %62 = tpu.matmul %61, %3, %cst_30 {dimension_numbers = #tpu.dot_dimension_numbers<[1], [0], [0], [1], [0, 0, 1, 1], [], []>} : vector<20x32xf32>, vector<32x64xf32>, vector<20x64xf32> -> vector<20x64xf32>
    %63 = vector.broadcast %9 : vector<1x64xf32> to vector<20x64xf32>
    %64 = arith.addf %62, %63 : vector<20x64xf32>
    %cst_31 = arith.constant 0.000000e+00 : f32
    %65 = vector.broadcast %cst_31 : f32 to vector<20x64xf32>
    %66 = arith.maximumf %64, %65 : vector<20x64xf32>
    %cst_32 = arith.constant dense<0.000000e+00> : vector<20x32xf32>
    %67 = tpu.matmul %66, %4, %cst_32 {dimension_numbers = #tpu.dot_dimension_numbers<[1], [0], [0], [1], [0, 0, 1, 1], [], []>} : vector<20x64xf32>, vector<64x32xf32>, vector<20x32xf32> -> vector<20x32xf32>
    %68 = vector.broadcast %10 : vector<1x32xf32> to vector<20x32xf32>
    %69 = arith.addf %67, %68 : vector<20x32xf32>
    %70 = arith.addf %61, %69 : vector<20x32xf32>
    %cst_33 = arith.constant dense<0.000000e+00> : vector<20xf32>
    %71 = vector.multi_reduction <add>, %70, %cst_33 [1] : vector<20x32xf32> to vector<20xf32>
    %72 = vector.shape_cast %71 : vector<20xf32> to vector<20x1xf32>
    %cst_34 = arith.constant 3.200000e+01 : f32
    %73 = vector.broadcast %cst_34 : f32 to vector<20x1xf32>
    %74 = arith.divf %72, %73 : vector<20x1xf32>
    %75 = vector.broadcast %74 : vector<20x1xf32> to vector<20x32xf32>
    %76 = arith.subf %70, %75 : vector<20x32xf32>
    %77 = arith.mulf %76, %76 : vector<20x32xf32>
    %cst_35 = arith.constant dense<0.000000e+00> : vector<20xf32>
    %78 = vector.multi_reduction <add>, %77, %cst_35 [1] : vector<20x32xf32> to vector<20xf32>
    %79 = vector.shape_cast %78 : vector<20xf32> to vector<20x1xf32>
    %cst_36 = arith.constant 3.200000e+01 : f32
    %80 = vector.broadcast %cst_36 : f32 to vector<20x1xf32>
    %81 = arith.divf %79, %80 : vector<20x1xf32>
    %82 = vector.broadcast %74 : vector<20x1xf32> to vector<20x32xf32>
    %83 = arith.subf %70, %82 : vector<20x32xf32>
    %cst_37 = arith.constant 9.99999974E-6 : f32
    %84 = vector.broadcast %cst_37 : f32 to vector<20x1xf32>
    %85 = arith.addf %81, %84 : vector<20x1xf32>
    %86 = math.rsqrt %85 : vector<20x1xf32>
    %87 = vector.broadcast %86 : vector<20x1xf32> to vector<20x32xf32>
    %88 = arith.mulf %83, %87 : vector<20x32xf32>
    %89 = vector.broadcast %13 : vector<1x32xf32> to vector<20x32xf32>
    %90 = arith.mulf %88, %89 : vector<20x32xf32>
    %91 = vector.broadcast %14 : vector<1x32xf32> to vector<20x32xf32>
    %92 = arith.addf %90, %91 : vector<20x32xf32>
    %c0_38 = arith.constant 0 : index
    %c0_39 = arith.constant 0 : index
    %93 = vector.load %arg4[%c0_38, %c0_39] : memref<20x32xf32, #tpu.memory_space<vmem>>, vector<20x32xf32>
    tpu.vector_store %arg4[%c0_38, %c0_39], %92 {strides = array<i32>} : memref<20x32xf32, #tpu.memory_space<vmem>>, vector<20x32xf32>,
    return
  }
  func.func @transform_0(%arg0: i32) -> (i32, i32) {
    %c0_i32 = arith.constant 0 : i32
    %c0_i32_0 = arith.constant 0 : i32
    %c0_i32_1 = arith.constant 0 : i32
    return %c0_i32, %c0_i32_0 : i32, i32
  }
  func.func @transform_1(%arg0: i32) -> (i32, i32) {
    %c0_i32 = arith.constant 0 : i32
    %c0_i32_0 = arith.constant 0 : i32
    %c0_i32_1 = arith.constant 0 : i32
    return %c0_i32, %c0_i32_0 : i32, i32
  }
  func.func @transform_2(%arg0: i32) -> (i32, i32) {
    %c0_i32 = arith.constant 0 : i32
    %c0_i32_0 = arith.constant 0 : i32
    %c0_i32_1 = arith.constant 0 : i32
    return %c0_i32, %c0_i32_0 : i32, i32
  }
  func.func @transform_3(%arg0: i32) -> (i32, i32) {
    %c0_i32 = arith.constant 0 : i32
    %c0_i32_0 = arith.constant 0 : i32
    %c0_i32_1 = arith.constant 0 : i32
    return %c0_i32, %c0_i32_0 : i32, i32
  }
}

</mosaic_0001>

<llo_original>
// kernel: tpu_custom_call.1
$region0: #{tpu_custom_call.1}
  #allocation0 [shape = 'u32[]', space=smem, size = 0x4, offset = 0x4, fixed_abs, tag = 'smem constant byte address 0x4 - core index']
  #allocation1 [shape = 'u32[72,128]{1,0:T(1,128)}', space=vmem, size = 0x9000, scoped, tag = 'internal scratch']
  %s0 = inlined_call_operand.hbm [shape: f32[20,32], index: 0, kind: input, shape index: {}]
  %s1 = inlined_call_operand.hbm [shape: f32[320,128], index: 1, kind: input, shape index: {}]
  %s2 = inlined_call_operand.hbm [shape: f32[32,128], index: 2, kind: input, shape index: {}]
  %s3 = inlined_call_operand.hbm [shape: f32[20,32], index: 3, kind: output, shape index: {}]
  %s4 = sld [smem:[#allocation0]]
  $region34: #{tpu_custom_call.1} parent=0
    _
  %s6 = ssub.s32 1, %s4
  %s7 = scalar_select 0, %s6, %s4
  $region1: #{tpu_custom_call.1} parent=0
    #allocation2 [shape = 'u8[12288]{0}', space=vmem, size = 0x3000, scoped, tag = 'input window, operand 0, single buffered']
    #allocation3 [shape = 's32[1]{0}', space=sflag, size = 0x4, scoped, tag = 'scoped memory for tpu_custom_call.1']
    #allocation4 [shape = 's32[1]{0}', space=sflag, size = 0x4, scoped, tag = 'scoped memory for tpu_custom_call.1']
    #allocation5 [shape = 'u8[163840]{0}', space=vmem, size = 0x28000, scoped, tag = 'input window, operand 1, single buffered']
    #allocation6 [shape = 's32[1]{0}', space=sflag, size = 0x4, scoped, tag = 'scoped memory for tpu_custom_call.1']
    #allocation7 [shape = 'u8[16384]{0}', space=vmem, size = 0x4000, scoped, tag = 'input window, operand 2, single buffered']
    #allocation8 [shape = 'u8[12288]{0}', space=vmem, size = 0x3000, scoped, tag = 'output window, operand 0, single buffered']
    %8 = vsyncpa [#allocation3], 0
    %9 = vsyncpa [#allocation6], 0
    %10 = vsyncpa [#allocation4], 0
    // Predicated region
    $region2: #{tpu_custom_call.1} parent=1 // pred_check
      _
    $region3: #{tpu_custom_call.1} parent=1 // pred_check_branch
      %12 = sbr.rel (0) target = $region5
    $region4: #{tpu_custom_call.1} parent=1 // pred_region
      %14 = vsyncadd [#allocation3], 0
      %s15 = sshll.u32 %s0, 4
      %s16 = int_to_ptr.hbm [resolvable:$true] %s15
      %s17 = sshll.u32 [#allocation2], 4
      %s18 = int_to_ptr.vmem [resolvable:$true] %s17
      %23 = dma.hbm_to_vmem [thread:$0]  %s16, 384, %s18, [#allocation3], 128, 128, 8
    $region5: #{tpu_custom_call.1} parent=1 // pred_fallthru
      _
    // Predicated region
    $region6: #{tpu_custom_call.1} parent=1 // pred_check
      _
    $region7: #{tpu_custom_call.1} parent=1 // pred_check_branch
      %25 = sbr.rel (0) target = $region9
    $region8: #{tpu_custom_call.1} parent=1 // pred_region
      %27 = vsyncadd [#allocation6], 0
      %s28 = sshll.u32 %s1, 4
      %s29 = int_to_ptr.hbm [resolvable:$true] %s28
      %s30 = sshll.u32 [#allocation5], 4
      %s31 = int_to_ptr.vmem [resolvable:$true] %s30
      %36 = dma.hbm_to_vmem [thread:$0]  %s29, 5120, %s31, [#allocation6], 128, 128, 8
    $region9: #{tpu_custom_call.1} parent=1 // pred_fallthru
      _
    // Predicated region
    $region10: #{tpu_custom_call.1} parent=1 // pred_check
      _
    $region11: #{tpu_custom_call.1} parent=1 // pred_check_branch
      %38 = sbr.rel (0) target = $region13
    $region12: #{tpu_custom_call.1} parent=1 // pred_region
      %40 = vsyncadd [#allocation6], 0
      %s41 = sshll.u32 %s2, 4
      %s42 = int_to_ptr.hbm [resolvable:$true] %s41
      %s43 = sshll.u32 [#allocation7], 4
      %s44 = int_to_ptr.vmem [resolvable:$true] %s43
      %49 = dma.hbm_to_vmem [thread:$0]  %s42, 512, %s44, [#allocation6], 128, 128, 8
    $region13: #{tpu_custom_call.1} parent=1 // pred_fallthru
      _
    // Predicated region
    $region14: #{tpu_custom_call.1} parent=1 // pred_check
      _
    $region15: #{tpu_custom_call.1} parent=1 // pred_check_branch
      %51 = sbr.rel (0) target = $region17
    $region16: #{tpu_custom_call.1} parent=1 // pred_region
      %53 = dma.done [#allocation3], 384
    $region17: #{tpu_custom_call.1} parent=1 // pred_fallthru
      _
    // Predicated region
    $region18: #{tpu_custom_call.1} parent=1 // pred_check
      _
    $region19: #{tpu_custom_call.1} parent=1 // pred_check_branch
      %55 = sbr.rel (0) target = $region21
    $region20: #{tpu_custom_call.1} parent=1 // pred_region
      %57 = dma.done [#allocation6], 5120
    $region21: #{tpu_custom_call.1} parent=1 // pred_fallthru
      _
    // Predicated region
    $region22: #{tpu_custom_call.1} parent=1 // pred_check
      _
    $region23: #{tpu_custom_call.1} parent=1 // pred_check_branch
      %59 = sbr.rel (0) target = $region25
    $region24: #{tpu_custom_call.1} parent=1 // pred_region
      %61 = dma.done [#allocation6], 512
    $region25: #{tpu_custom_call.1} parent=1 // pred_fallthru
      _
    %v62 = vld [vmem:[#allocation2] sm:$0xff]
    %v63 = vld [vmem:[#allocation2 + $0x8] sm:$0xff]
    %v64 = vld [vmem:[#allocation2 + $0x10] sm:$0xf]
    %v65 = vld [vmem:[#allocation5] sm:$0xff]
    %v66 = vld [vmem:[#allocation5 + $0x8] sm:$0xff]
    %v67 = vld [vmem:[#allocation5 + $0x10] sm:$0xff]
    %v68 = vld [vmem:[#allocation5 + $0x18] sm:$0xff]
    %v69 = vld [vmem:[#allocation5 + $0x20] sm:$0xff]
    %v70 = vld [vmem:[#allocation5 + $0x28] sm:$0xff]
    %v71 = vld [vmem:[#allocation5 + $0x30] sm:$0xff]
    %v72 = vld [vmem:[#allocation5 + $0x38] sm:$0xff]
    %v73 = vld [vmem:[#allocation5 + $0x40] sm:$0xff]
    %v74 = vld [vmem:[#allocation5 + $0x48] sm:$0xff]
    %v75 = vld [vmem:[#allocation5 + $0x50] sm:$0xff]
    %v76 = vld [vmem:[#allocation5 + $0x58] sm:$0xff]
    %v77 = vld [vmem:[#allocation5 + $0x60] sm:$0xff]
    %v78 = vld [vmem:[#allocation5 + $0x68] sm:$0xff]
    %v79 = vld [vmem:[#allocation5 + $0x70] sm:$0xff]
    %v80 = vld [vmem:[#allocation5 + $0x78] sm:$0xff]
    %v81 = vld [vmem:[#allocation5 + $0x80] sm:$0xff]
    %v82 = vld [vmem:[#allocation5 + $0x88] sm:$0xff]
    %v83 = vld [vmem:[#allocation5 + $0x90] sm:$0xff]
    %v84 = vld [vmem:[#allocation5 + $0x98] sm:$0xff]
    %v85 = vld [vmem:[#allocation5 + $0xa0] sm:$0xff]
    %v86 = vld [vmem:[#allocation5 + $0xa8] sm:$0xff]
    %v87 = vld [vmem:[#allocation5 + $0xb0] sm:$0xff]
    %v88 = vld [vmem:[#allocation5 + $0xb8] sm:$0xff]
    %v89 = vld [vmem:[#allocation5 + $0xc0] sm:$0xff]
    %v90 = vld [vmem:[#allocation5 + $0xc8] sm:$0xff]
    %v91 = vld [vmem:[#allocation5 + $0xd0] sm:$0xff]
    %v92 = vld [vmem:[#allocation5 + $0xd8] sm:$0xff]
    %v93 = vld [vmem:[#allocation5 + $0xe0] sm:$0xff]
    %v94 = vld [vmem:[#allocation5 + $0xe8] sm:$0xff]
    %v95 = vld [vmem:[#allocation5 + $0xf0] sm:$0xff]
    %v96 = vld [vmem:[#allocation5 + $0xf8] sm:$0xff]
    %v97 = vld [vmem:[#allocation5 + $0x100] sm:$0xff]
    %v98 = vld [vmem:[#allocation5 + $0x108] sm:$0xff]
    %v99 = vld [vmem:[#allocation5 + $0x110] sm:$0xff]
    %v100 = vld [vmem:[#allocation5 + $0x118] sm:$0xff]
    %v101 = vld [vmem:[#allocation5 + $0x120] sm:$0xff]
    %v102 = vld [vmem:[#allocation5 + $0x128] sm:$0xff]
    %v103 = vld [vmem:[#allocation5 + $0x130] sm:$0xff]
    %v104 = vld [vmem:[#allocation5 + $0x138] sm:$0xff]
    %v105 = vld [vmem:[#allocation7] sm:$0x1]
    %v106 = vld [vmem:[#allocation7 + $0x1] sm:$0x1]
    %v107 = vld [vmem:[#allocation7 + $0x2] sm:$0x1]
    %v108 = vld [vmem:[#allocation7 + $0x3] sm:$0x1]
    %v109 = vld [vmem:[#allocation7 + $0x4] sm:$0x1]
    %v110 = vld [vmem:[#allocation7 + $0x5] sm:$0x1]
    %v111 = vld [vmem:[#allocation7 + $0x6] sm:$0x1]
    %v112 = vld [vmem:[#allocation7 + $0x7] sm:$0x1]
    %v113 = vld [vmem:[#allocation7 + $0x8] sm:$0xff]
    %v114 = vld [vmem:[#allocation7 + $0x10] sm:$0xff]
    %v115 = vld [vmem:[#allocation7 + $0x18] sm:$0xf]
    %v116 = vperm.slane %v105, 0
    %vm117 = vcmask 261120
    %v119 = vsel %vm117, %v62, 0
    %v122 = vsel %vm117, %v63, 0
    %v125 = vsel %vm117, %v64, 0
    %127 = vmatpush.msra.mxu0 0.0
    %128 = vmatpush.msra.mxu0 0.0
    %129 = vmatpush.msra.mxu0 0.0
    %130 = vmatpush.msra.mxu0 0.0
    %131 = vmatpush.msra.mxu0 0.0
    %132 = vmatpush.msra.mxu0 0.0
    %133 = vmatpush.msra.mxu0 0.0
    %134 = vmatpush.msra.mxu0 0.0
    %135 = vmatpush.msra.mxu0 0.0
    %136 = vmatpush.msra.mxu0 0.0
    %137 = vmatpush.msra.mxu0 0.0
    %138 = vmatpush.msra.mxu0 0.0
    %139 = vmatpush.msra.mxu0 %v68
    %140 = vmatpush.msra.mxu0 %v67
    %141 = vmatpush.msra.mxu0 %v66
    %142 = vmatpush.msra.mxu0 %v65
    %143 = vmatmul.f32.gmra.mxu0 %v119
    %v144 = vpop.f32.mrf.mxu0
    %v145 = vadd.f32 %v116, %v144
    %146 = vmatmul.f32.gmra.mxu0 %v122
    %v147 = vpop.f32.mrf.mxu0
    %v148 = vadd.f32 %v116, %v147
    %149 = vmatmul.f32.gmra.mxu0 %v125
    %v150 = vpop.f32.mrf.mxu0
    %v151 = vadd.f32 %v116, %v150
    %152 = vdwg.mxu0
    %156 = vrot.lane.b32.xlu0 %v145, 96
    %v157 = vpop.permute.xlu0 %156
    %158 = vrot.lane.b32.xlu0 %v148, 96
    %v159 = vpop.permute.xlu0 %158
    %160 = vrot.lane.b32.xlu0 %v151, 96
    %v161 = vpop.permute.xlu0 %160
    %vm164 = vcmask 162816
    %v166 = vsel %vm164, %v85, 0
    %v169 = vsel %vm164, %v86, 0
    %v172 = vsel %vm164, %v87, 0
    %v175 = vsel %vm164, %v88, 0
    %v178 = vsel %vm164, %v89, 0
    %v181 = vsel %vm164, %v90, 0
    %v184 = vsel %vm164, %v91, 0
    %v187 = vsel %vm164, %v92, 0
    %v190 = vsel %vm164, %v93, 0
    %v193 = vsel %vm164, %v94, 0
    %vm195 = vcmask 1043456
    %v196 = vsel %vm195, %v161, 0
    %198 = vmatpush.msra.mxu0 0.0
    %199 = vmatpush.msra.mxu0 0.0
    %200 = vmatpush.msra.mxu0 0.0
    %201 = vmatpush.msra.mxu0 0.0
    %202 = vmatpush.msra.mxu0 0.0
    %203 = vmatpush.msra.mxu0 0.0
    %204 = vmatpush.msra.mxu0 0.0
    %205 = vmatpush.msra.mxu0 0.0
    %206 = vmatpush.msra.mxu0 0.0
    %207 = vmatpush.msra.mxu0 0.0
    %208 = vmatpush.msra.mxu0 0.0
    %209 = vmatpush.msra.mxu0 0.0
    %210 = vmatpush.msra.mxu0 0.0
    %211 = vmatpush.msra.mxu0 %v196
    %212 = vmatpush.msra.mxu0 %v159
    %213 = vmatpush.msra.mxu0 %v157
    %214 = vmatmul.f32.gmra.mxu0 %v166
    %v215 = vpop.f32.mrf.mxu0
    %v216 = vadd.f32 0.0, %v215
    %217 = vmatmul.f32.gmra.mxu0 %v169
    %v218 = vpop.f32.mrf.mxu0
    %v219 = vadd.f32 0.0, %v218
    %220 = vmatmul.f32.gmra.mxu0 %v172
    %v221 = vpop.f32.mrf.mxu0
    %v222 = vadd.f32 0.0, %v221
    %223 = vmatmul.f32.gmra.mxu0 %v175
    %v224 = vpop.f32.mrf.mxu0
    %v225 = vadd.f32 0.0, %v224
    %226 = vmatmul.f32.gmra.mxu0 %v178
    %v227 = vpop.f32.mrf.mxu0
    %v228 = vadd.f32 0.0, %v227
    %229 = vmatmul.f32.gmra.mxu0 %v181
    %v230 = vpop.f32.mrf.mxu0
    %v231 = vadd.f32 0.0, %v230
    %232 = vmatmul.f32.gmra.mxu0 %v184
    %v233 = vpop.f32.mrf.mxu0
    %v234 = vadd.f32 0.0, %v233
    %235 = vmatmul.f32.gmra.mxu0 %v187
    %v236 = vpop.f32.mrf.mxu0
    %v237 = vadd.f32 0.0, %v236
    %238 = vmatmul.f32.gmra.mxu0 %v190
    %v239 = vpop.f32.mrf.mxu0
    %v240 = vadd.f32 0.0, %v239
    %241 = vmatmul.f32.gmra.mxu0 %v193
    %v242 = vpop.f32.mrf.mxu0
    %v243 = vadd.f32 0.0, %v242
    %244 = vdwg.mxu0
    %v245 = vmul.f32 %v216, %v95
    %v246 = vmul.f32 %v219, %v96
    %v247 = vmul.f32 %v222, %v97
    %v248 = vmul.f32 %v225, %v98
    %v249 = vmul.f32 %v228, %v99
    %v250 = vmul.f32 %v231, %v100
    %v251 = vmul.f32 %v234, %v101
    %v252 = vmul.f32 %v237, %v102
    %v253 = vmul.f32 %v240, %v103
    %v254 = vmul.f32 %v243, %v104
    %255 = vrot.lane.b32.xlu0 %v145, 64
    %v256 = vpop.permute.xlu0 %255
    %257 = vrot.lane.b32.xlu0 %v148, 64
    %v258 = vpop.permute.xlu0 %257
    %259 = vrot.lane.b32.xlu0 %v151, 64
    %v260 = vpop.permute.xlu0 %259
    %v263 = vsel %vm195, %v260, 0
    %265 = vmatpush.msra.mxu0 0.0
    %266 = vmatpush.msra.mxu0 0.0
    %267 = vmatpush.msra.mxu0 0.0
    %268 = vmatpush.msra.mxu0 0.0
    %269 = vmatpush.msra.mxu0 0.0
    %270 = vmatpush.msra.mxu0 0.0
    %271 = vmatpush.msra.mxu0 0.0
    %272 = vmatpush.msra.mxu0 0.0
    %273 = vmatpush.msra.mxu0 0.0
    %274 = vmatpush.msra.mxu0 0.0
    %275 = vmatpush.msra.mxu0 0.0
    %276 = vmatpush.msra.mxu0 0.0
    %277 = vmatpush.msra.mxu0 0.0
    %278 = vmatpush.msra.mxu0 %v263
    %279 = vmatpush.msra.mxu0 %v258
    %280 = vmatpush.msra.mxu0 %v256
    %281 = vmatmul.f32.gmra.mxu0 %v166
    %v282 = vpop.f32.mrf.mxu0
    %v283 = vadd.f32 0.0, %v282
    %284 = vmatmul.f32.gmra.mxu0 %v169
    %v285 = vpop.f32.mrf.mxu0
    %v286 = vadd.f32 0.0, %v285
    %287 = vmatmul.f32.gmra.mxu0 %v172
    %v288 = vpop.f32.mrf.mxu0
    %v289 = vadd.f32 0.0, %v288
    %290 = vmatmul.f32.gmra.mxu0 %v175
    %v291 = vpop.f32.mrf.mxu0
    %v292 = vadd.f32 0.0, %v291
    %293 = vmatmul.f32.gmra.mxu0 %v178
    %v294 = vpop.f32.mrf.mxu0
    %v295 = vadd.f32 0.0, %v294
    %296 = vmatmul.f32.gmra.mxu0 %v181
    %v297 = vpop.f32.mrf.mxu0
    %v298 = vadd.f32 0.0, %v297
    %299 = vmatmul.f32.gmra.mxu0 %v184
    %v300 = vpop.f32.mrf.mxu0
    %v301 = vadd.f32 0.0, %v300
    %302 = vmatmul.f32.gmra.mxu0 %v187
    %v303 = vpop.f32.mrf.mxu0
    %v304 = vadd.f32 0.0, %v303
    %305 = vmatmul.f32.gmra.mxu0 %v190
    %v306 = vpop.f32.mrf.mxu0
    %v307 = vadd.f32 0.0, %v306
    %308 = vmatmul.f32.gmra.mxu0 %v193
    %v309 = vpop.f32.mrf.mxu0
    %v310 = vadd.f32 0.0, %v309
    %311 = vdwg.mxu0
    %v312 = vmul.f32 %v283, %v95
    %v313 = vmul.f32 %v286, %v96
    %v314 = vmul.f32 %v289, %v97
    %v315 = vmul.f32 %v292, %v98
    %v316 = vmul.f32 %v295, %v99
    %v317 = vmul.f32 %v298, %v100
    %v318 = vmul.f32 %v301, %v101
    %v319 = vmul.f32 %v304, %v102
    %v320 = vmul.f32 %v307, %v103
    %v321 = vmul.f32 %v310, %v104
    %v322 = vsel %vm117, %v145, 0
    %v324 = vsel %vm117, %v148, 0
    %v326 = vsel %vm117, %v151, 0
    %v329 = vsel %vm117, %v245, 0
    %v332 = vsel %vm117, %v246, 0
    %v335 = vsel %vm117, %v247, 0
    %v338 = vsel %vm117, %v248, 0
    %v341 = vsel %vm117, %v249, 0
    %v344 = vsel %vm117, %v250, 0
    %v347 = vsel %vm117, %v251, 0
    %v350 = vsel %vm117, %v252, 0
    %v353 = vsel %vm117, %v253, 0
    %v356 = vsel %vm117, %v254, 0
    %358 = vmatpush.xpose.msra.mxu0 0.0
    %359 = vmatpush.xpose.msra.mxu0 0.0
    %360 = vmatpush.xpose.msra.mxu0 0.0
    %361 = vmatpush.xpose.msra.mxu0 0.0
    %362 = vmatpush.xpose.msra.mxu0 0.0
    %363 = vmatpush.xpose.msra.mxu0 0.0
    %364 = vmatpush.xpose.msra.mxu0 %v356
    %365 = vmatpush.xpose.msra.mxu0 %v353
    %366 = vmatpush.xpose.msra.mxu0 %v350
    %367 = vmatpush.xpose.msra.mxu0 %v347
    %368 = vmatpush.xpose.msra.mxu0 %v344
    %369 = vmatpush.xpose.msra.mxu0 %v341
    %370 = vmatpush.xpose.msra.mxu0 %v338
    %371 = vmatpush.xpose.msra.mxu0 %v335
    %372 = vmatpush.xpose.msra.mxu0 %v332
    %373 = vmatpush.xpose.msra.mxu0 %v329
    %374 = vmatmul.f32.gmra.mxu0 %v322
    %v375 = vpop.f32.mrf.mxu0
    %v376 = vadd.f32 %v113, %v375
    %377 = vmatmul.f32.gmra.mxu0 %v324
    %v378 = vpop.f32.mrf.mxu0
    %v379 = vadd.f32 %v114, %v378
    %380 = vmatmul.f32.gmra.mxu0 %v326
    %v381 = vpop.f32.mrf.mxu0
    %v382 = vadd.f32 %v115, %v381
    %383 = vdwg.mxu0
    %vm384 = vcmask 654336
    %v385 = vsel %vm384, %v376, -inf
    %386 = vmax.xlane.f32.xlu0 %v385
    %v387 = vpop.xlane.xlu0 %386
    %v388 = vsel %vm384, %v379, -inf
    %389 = vmax.xlane.f32.xlu0 %v388
    %v390 = vpop.xlane.xlu0 %389
    %vm391 = vcmask 650240
    %v392 = vsel %vm391, %v382, -inf
    %393 = vmax.xlane.f32.xlu0 %v392
    %v394 = vpop.xlane.xlu0 %393
    %v395 = vsub.f32 %v376, %v387
    %v396 = vsub.f32 %v379, %v390
    %v397 = vsub.f32 %v382, %v394
    %v398 = vmul.f32 %v395, 1.442695
    %v399 = vpow.pop %v398
    %v400 = vmul.f32 %v396, 1.442695
    %v401 = vpow.pop %v400
    %v402 = vmul.f32 %v397, 1.442695
    %v403 = vpow.pop %v402
    %v405 = vsel %vm384, %v399, 0
    %v408 = vsel %vm384, %v401, 0
    %v411 = vsel %vm384, %v403, 0
    %413 = vmatpush.msra.mxu0 0.0
    %414 = vmatpush.msra.mxu0 0.0
    %415 = vmatpush.msra.mxu0 0.0
    %416 = vmatpush.msra.mxu0 0.0
    %417 = vmatpush.msra.mxu0 0.0
    %418 = vmatpush.msra.mxu0 0.0
    %419 = vmatpush.msra.mxu0 %v321
    %420 = vmatpush.msra.mxu0 %v320
    %421 = vmatpush.msra.mxu0 %v319
    %422 = vmatpush.msra.mxu0 %v318
    %423 = vmatpush.msra.mxu0 %v317
    %424 = vmatpush.msra.mxu0 %v316
    %425 = vmatpush.msra.mxu0 %v315
    %426 = vmatpush.msra.mxu0 %v314
    %427 = vmatpush.msra.mxu0 %v313
    %428 = vmatpush.msra.mxu0 %v312
    %429 = vmatmul.f32.gmra.mxu0 %v405
    %v430 = vpop.f32.mrf.mxu0
    %v431 = vadd.f32 0.0, %v430
    %432 = vmatmul.f32.gmra.mxu0 %v408
    %v433 = vpop.f32.mrf.mxu0
    %v434 = vadd.f32 0.0, %v433
    %435 = vmatmul.f32.gmra.mxu0 %v411
    %v436 = vpop.f32.mrf.mxu0
    %v437 = vadd.f32 0.0, %v436
    %438 = vdwg.mxu0
    %439 = vmatpush.msra.mxu0 0.0
    %440 = vmatpush.msra.mxu0 0.0
    %441 = vmatpush.msra.mxu0 0.0
    %442 = vmatpush.msra.mxu0 0.0
    %443 = vmatpush.msra.mxu0 0.0
    %444 = vmatpush.msra.mxu0 0.0
    %445 = vmatpush.msra.mxu0 %v104
    %446 = vmatpush.msra.mxu0 %v103
    %447 = vmatpush.msra.mxu0 %v102
    %448 = vmatpush.msra.mxu0 %v101
    %449 = vmatpush.msra.mxu0 %v100
    %450 = vmatpush.msra.mxu0 %v99
    %451 = vmatpush.msra.mxu0 %v98
    %452 = vmatpush.msra.mxu0 %v97
    %453 = vmatpush.msra.mxu0 %v96
    %454 = vmatpush.msra.mxu0 %v95
    %455 = vmatmul.f32.gmra.mxu0 %v405
    %v456 = vpop.f32.mrf.mxu0
    %v457 = vadd.f32 0.0, %v456
    %458 = vmatmul.f32.gmra.mxu0 %v408
    %v459 = vpop.f32.mrf.mxu0
    %v460 = vadd.f32 0.0, %v459
    %461 = vmatmul.f32.gmra.mxu0 %v411
    %v462 = vpop.f32.mrf.mxu0
    %v463 = vadd.f32 0.0, %v462
    %464 = vdwg.mxu0
    %v465 = vrcp.pop %v457
    %v466 = vmul.f32 %v457, %v465
    %v467 = vsub.f32 1.0, %v466
    %v468 = vmul.f32 %v465, %v467
    %v469 = vadd.f32 %v465, %v468
    %vm470 = vweird.f32 %v457
    %vm471 = vweird.f32 %v465
    %vm472 = vmor %vm470, %vm471
    %v473 = vsel %vm472, %v465, %v469
    %v474 = vand.u32 2147483647, %v457
    %vm475 = vcmp.eq.f32.partialorder %v474, 8.507059e+37
    %v476 = vand.u32 %v457, 2147483648
    %v477 = vor.u32 1.1754944e-38, %v476
    %v478 = vsel %vm475, %v477, %v473
    %v479 = vmul.f32 %v431, %v478
    %v480 = vrcp.pop %v460
    %v481 = vmul.f32 %v460, %v480
    %v482 = vsub.f32 1.0, %v481
    %v483 = vmul.f32 %v480, %v482
    %v484 = vadd.f32 %v480, %v483
    %vm485 = vweird.f32 %v460
    %vm486 = vweird.f32 %v480
    %vm487 = vmor %vm485, %vm486
    %v488 = vsel %vm487, %v480, %v484
    %v489 = vand.u32 2147483647, %v460
    %vm490 = vcmp.eq.f32.partialorder %v489, 8.507059e+37
    %v491 = vand.u32 %v460, 2147483648
    %v492 = vor.u32 1.1754944e-38, %v491
    %v493 = vsel %vm490, %v492, %v488
    %v494 = vmul.f32 %v434, %v493
    %v495 = vrcp.pop %v463
    %v496 = vmul.f32 %v463, %v495
    %v497 = vsub.f32 1.0, %v496
    %v498 = vmul.f32 %v495, %v497
    %v499 = vadd.f32 %v495, %v498
    %vm500 = vweird.f32 %v463
    %vm501 = vweird.f32 %v495
    %vm502 = vmor %vm500, %vm501
    %v503 = vsel %vm502, %v495, %v499
    %v504 = vand.u32 2147483647, %v463
    %vm505 = vcmp.eq.f32.partialorder %v504, 8.507059e+37
    %v506 = vand.u32 %v463, 2147483648
    %v507 = vor.u32 1.1754944e-38, %v506
    %v508 = vsel %vm505, %v507, %v503
    %v509 = vmul.f32 %v437, %v508
    %v510 = vperm.slane %v106, 0
    %v512 = vsel %vm117, %v479, 0
    %v515 = vsel %vm117, %v494, 0
    %v518 = vsel %vm117, %v509, 0
    %520 = vmatpush.msra.mxu0 0.0
    %521 = vmatpush.msra.mxu0 0.0
    %522 = vmatpush.msra.mxu0 0.0
    %523 = vmatpush.msra.mxu0 0.0
    %524 = vmatpush.msra.mxu0 0.0
    %525 = vmatpush.msra.mxu0 0.0
    %526 = vmatpush.msra.mxu0 0.0
    %527 = vmatpush.msra.mxu0 0.0
    %528 = vmatpush.msra.mxu0 0.0
    %529 = vmatpush.msra.mxu0 0.0
    %530 = vmatpush.msra.mxu0 0.0
    %531 = vmatpush.msra.mxu0 0.0
    %532 = vmatpush.msra.mxu0 %v72
    %533 = vmatpush.msra.mxu0 %v71
    %534 = vmatpush.msra.mxu0 %v70
    %535 = vmatpush.msra.mxu0 %v69
    %536 = vmatmul.f32.gmra.mxu0 %v512
    %v537 = vpop.f32.mrf.mxu0
    %v538 = vadd.f32 %v510, %v537
    %539 = vmatmul.f32.gmra.mxu0 %v515
    %v540 = vpop.f32.mrf.mxu0
    %v541 = vadd.f32 %v510, %v540
    %542 = vmatmul.f32.gmra.mxu0 %v518
    %v543 = vpop.f32.mrf.mxu0
    %v544 = vadd.f32 %v510, %v543
    %545 = vdwg.mxu0
    %v546 = vadd.f32 %v62, %v538
    %v547 = vadd.f32 %v63, %v541
    %v548 = vadd.f32 %v64, %v544
    %v549 = vsel %vm117, %v546, 0.0
    %550 = vadd.xlane.f32.xlu0 %v549
    %v551 = vpop.xlane.xlu0 %550
    %v552 = vsel %vm117, %v547, 0.0
    %553 = vadd.xlane.f32.xlu0 %v552
    %v554 = vpop.xlane.xlu0 %553
    %vm555 = vcmask 257024
    %v556 = vsel %vm555, %v548, 0.0
    %557 = vadd.xlane.f32.xlu0 %v556
    %v558 = vpop.xlane.xlu0 %557
    %v559 = vrcp.pop 32.0
    %v560 = vmul.f32 32.0, %v559
    %v561 = vsub.f32 1.0, %v560
    %v562 = vmul.f32 %v559, %v561
    %v563 = vadd.f32 %v559, %v562
    %vm564 = vweird.f32 %v559
    %v565 = vsel %vm564, %v559, %v563
    %v566 = vmul.f32 %v551, %v565
    %v567 = vmul.f32 %v554, %v565
    %v568 = vmul.f32 %v558, %v565
    %v569 = vsub.f32 %v546, %v566
    %v570 = vsub.f32 %v547, %v567
    %v571 = vsub.f32 %v548, %v568
    %v572 = vmul.f32 %v569, %v569
    %v573 = vmul.f32 %v570, %v570
    %v574 = vmul.f32 %v571, %v571
    %v575 = vsel %vm117, %v572, 0.0
    %576 = vadd.xlane.f32.xlu0 %v575
    %v577 = vpop.xlane.xlu0 %576
    %v578 = vsel %vm117, %v573, 0.0
    %579 = vadd.xlane.f32.xlu0 %v578
    %v580 = vpop.xlane.xlu0 %579
    %v581 = vsel %vm555, %v574, 0.0
    %582 = vadd.xlane.f32.xlu0 %v581
    %v583 = vpop.xlane.xlu0 %582
    %v584 = vmul.f32 %v577, %v565
    %v585 = vmul.f32 %v580, %v565
    %v586 = vmul.f32 %v583, %v565
    %v587 = vadd.f32 %v584, 1e-05
    %v588 = vadd.f32 %v585, 1e-05
    %v589 = vadd.f32 %v586, 1e-05
    %v590 = vrsqrt.pop %v587
    %v591 = vmul.f32 %v590, %v587
    %v592 = vmul.f32 %v591, %v590
    %v593 = vmul.f32 0.5, %v592
    %v594 = vsub.f32 1.5, %v593
    %v595 = vmul.f32 %v590, %v594
    %vm596 = vweird.f32 %v587
    %vm597 = vweird.f32 %v590
    %vm598 = vmor %vm596, %vm597
    %v599 = vsel %vm598, %v590, %v595
    %v600 = vrsqrt.pop %v588
    %v601 = vmul.f32 %v600, %v588
    %v602 = vmul.f32 %v601, %v600
    %v603 = vmul.f32 0.5, %v602
    %v604 = vsub.f32 1.5, %v603
    %v605 = vmul.f32 %v600, %v604
    %vm606 = vweird.f32 %v588
    %vm607 = vweird.f32 %v600
    %vm608 = vmor %vm606, %vm607
    %v609 = vsel %vm608, %v600, %v605
    %v610 = vrsqrt.pop %v589
    %v611 = vmul.f32 %v610, %v589
    %v612 = vmul.f32 %v611, %v610
    %v613 = vmul.f32 0.5, %v612
    %v614 = vsub.f32 1.5, %v613
    %v615 = vmul.f32 %v610, %v614
    %vm616 = vweird.f32 %v589
    %vm617 = vweird.f32 %v610
    %vm618 = vmor %vm616, %vm617
    %v619 = vsel %vm618, %v610, %v615
    %v620 = vmul.f32 %v569, %v599
    %v621 = vmul.f32 %v570, %v609
    %v622 = vmul.f32 %v571, %v619
    %v623 = vperm.slane %v109, 0
    %v624 = vmul.f32 %v620, %v623
    %v625 = vmul.f32 %v621, %v623
    %v626 = vmul.f32 %v622, %v623
    %v627 = vperm.slane %v110, 0
    %v628 = vadd.f32 %v624, %v627
    %v629 = vadd.f32 %v625, %v627
    %v630 = vadd.f32 %v626, %v627
    %v631 = vperm.slane %v107, 0
    %v633 = vsel %vm117, %v628, 0
    %v636 = vsel %vm117, %v629, 0
    %v639 = vsel %vm117, %v630, 0
    %641 = vmatpush.msra.mxu0 0.0
    %642 = vmatpush.msra.mxu0 0.0
    %643 = vmatpush.msra.mxu0 0.0
    %644 = vmatpush.msra.mxu0 0.0
    %645 = vmatpush.msra.mxu0 0.0
    %646 = vmatpush.msra.mxu0 0.0
    %647 = vmatpush.msra.mxu0 0.0
    %648 = vmatpush.msra.mxu0 0.0
    %649 = vmatpush.msra.mxu0 0.0
    %650 = vmatpush.msra.mxu0 0.0
    %651 = vmatpush.msra.mxu0 0.0
    %652 = vmatpush.msra.mxu0 0.0
    %653 = vmatpush.msra.mxu0 %v76
    %654 = vmatpush.msra.mxu0 %v75
    %655 = vmatpush.msra.mxu0 %v74
    %656 = vmatpush.msra.mxu0 %v73
    %657 = vmatmul.f32.gmra.mxu0 %v633
    %v658 = vpop.f32.mrf.mxu0
    %v659 = vadd.f32 %v631, %v658
    %660 = vmatmul.f32.gmra.mxu0 %v636
    %v661 = vpop.f32.mrf.mxu0
    %v662 = vadd.f32 %v631, %v661
    %663 = vmatmul.f32.gmra.mxu0 %v639
    %v664 = vpop.f32.mrf.mxu0
    %v665 = vadd.f32 %v631, %v664
    %666 = vdwg.mxu0
    %v667 = vmax.f32 %v659, 0.0
    %v668 = vmax.f32 %v662, 0.0
    %v669 = vmax.f32 %v665, 0.0
    %v670 = vperm.slane %v108, 0
    %vm671 = vcmask 523264
    %v673 = vsel %vm671, %v667, 0
    %v676 = vsel %vm671, %v668, 0
    %v679 = vsel %vm671, %v669, 0
    %681 = vmatpush.msra.mxu0 0.0
    %682 = vmatpush.msra.mxu0 0.0
    %683 = vmatpush.msra.mxu0 0.0
    %684 = vmatpush.msra.mxu0 0.0
    %685 = vmatpush.msra.mxu0 0.0
    %686 = vmatpush.msra.mxu0 0.0
    %687 = vmatpush.msra.mxu0 0.0
    %688 = vmatpush.msra.mxu0 0.0
    %689 = vmatpush.msra.mxu0 %v84
    %690 = vmatpush.msra.mxu0 %v83
    %691 = vmatpush.msra.mxu0 %v82
    %692 = vmatpush.msra.mxu0 %v81
    %693 = vmatpush.msra.mxu0 %v80
    %694 = vmatpush.msra.mxu0 %v79
    %695 = vmatpush.msra.mxu0 %v78
    %696 = vmatpush.msra.mxu0 %v77
    %697 = vmatmul.f32.gmra.mxu0 %v673
    %v698 = vpop.f32.mrf.mxu0
    %v699 = vadd.f32 %v670, %v698
    %700 = vmatmul.f32.gmra.mxu0 %v676
    %v701 = vpop.f32.mrf.mxu0
    %v702 = vadd.f32 %v670, %v701
    %703 = vmatmul.f32.gmra.mxu0 %v679
    %v704 = vpop.f32.mrf.mxu0
    %v705 = vadd.f32 %v670, %v704
    %706 = vdwg.mxu0
    %v707 = vadd.f32 %v628, %v699
    %v708 = vadd.f32 %v629, %v702
    %v709 = vadd.f32 %v630, %v705
    %v710 = vsel %vm117, %v707, 0.0
    %711 = vadd.xlane.f32.xlu0 %v710
    %v712 = vpop.xlane.xlu0 %711
    %v713 = vsel %vm117, %v708, 0.0
    %714 = vadd.xlane.f32.xlu0 %v713
    %v715 = vpop.xlane.xlu0 %714
    %v716 = vsel %vm555, %v709, 0.0
    %717 = vadd.xlane.f32.xlu0 %v716
    %v718 = vpop.xlane.xlu0 %717
    %v719 = vmul.f32 %v712, %v565
    %v720 = vmul.f32 %v715, %v565
    %v721 = vmul.f32 %v718, %v565
    %v722 = vsub.f32 %v707, %v719
    %v723 = vsub.f32 %v708, %v720
    %v724 = vsub.f32 %v709, %v721
    %v725 = vmul.f32 %v722, %v722
    %v726 = vmul.f32 %v723, %v723
    %v727 = vmul.f32 %v724, %v724
    %v728 = vsel %vm117, %v725, 0.0
    %729 = vadd.xlane.f32.xlu0 %v728
    %v730 = vpop.xlane.xlu0 %729
    %v731 = vsel %vm117, %v726, 0.0
    %732 = vadd.xlane.f32.xlu0 %v731
    %v733 = vpop.xlane.xlu0 %732
    %v734 = vsel %vm555, %v727, 0.0
    %735 = vadd.xlane.f32.xlu0 %v734
    %v736 = vpop.xlane.xlu0 %735
    %v737 = vmul.f32 %v730, %v565
    %v738 = vmul.f32 %v733, %v565
    %v739 = vmul.f32 %v736, %v565
    %v740 = vadd.f32 %v737, 1e-05
    %v741 = vadd.f32 %v738, 1e-05
    %v742 = vadd.f32 %v739, 1e-05
    %v743 = vrsqrt.pop %v740
    %v744 = vmul.f32 %v743, %v740
    %v745 = vmul.f32 %v744, %v743
    %v746 = vmul.f32 0.5, %v745
    %v747 = vsub.f32 1.5, %v746
    %v748 = vmul.f32 %v743, %v747
    %vm749 = vweird.f32 %v740
    %vm750 = vweird.f32 %v743
    %vm751 = vmor %vm749, %vm750
    %v752 = vsel %vm751, %v743, %v748
    %v753 = vrsqrt.pop %v741
    %v754 = vmul.f32 %v753, %v741
    %v755 = vmul.f32 %v754, %v753
    %v756 = vmul.f32 0.5, %v755
    %v757 = vsub.f32 1.5, %v756
    %v758 = vmul.f32 %v753, %v757
    %vm759 = vweird.f32 %v741
    %vm760 = vweird.f32 %v753
    %vm761 = vmor %vm759, %vm760
    %v762 = vsel %vm761, %v753, %v758
    %v763 = vrsqrt.pop %v742
    %v764 = vmul.f32 %v763, %v742
    %v765 = vmul.f32 %v764, %v763
    %v766 = vmul.f32 0.5, %v765
    %v767 = vsub.f32 1.5, %v766
    %v768 = vmul.f32 %v763, %v767
    %vm769 = vweird.f32 %v742
    %vm770 = vweird.f32 %v763
    %vm771 = vmor %vm769, %vm770
    %v772 = vsel %vm771, %v763, %v768
    %v773 = vmul.f32 %v722, %v752
    %v774 = vmul.f32 %v723, %v762
    %v775 = vmul.f32 %v724, %v772
    %v776 = vperm.slane %v111, 0
    %v777 = vmul.f32 %v773, %v776
    %v778 = vmul.f32 %v774, %v776
    %v779 = vmul.f32 %v775, %v776
    %v780 = vperm.slane %v112, 0
    %v781 = vadd.f32 %v777, %v780
    %v782 = vadd.f32 %v778, %v780
    %v783 = vadd.f32 %v779, %v780
    %784 = vst.msk [vmem:[#allocation8] sm:$0xff] %vm117, %v781
    %785 = vst.msk [vmem:[#allocation8 + $0x8] sm:$0xff] %vm117, %v782
    %786 = vst.msk [vmem:[#allocation8 + $0x10] sm:$0xf] %vm555, %v783
    // Predicated region
    $region26: #{tpu_custom_call.1} parent=1 // pred_check
      _
    $region27: #{tpu_custom_call.1} parent=1 // pred_check_branch
      %788 = sbr.rel (0) target = $region29
    $region28: #{tpu_custom_call.1} parent=1 // pred_region
      %790 = vsyncadd [#allocation4], 0
      %s791 = sshll.u32 [#allocation8], 4
      %s792 = int_to_ptr.vmem [resolvable:$true] %s791
      %s793 = sshll.u32 %s3, 4
      %s794 = int_to_ptr.hbm [resolvable:$true] %s793
      %799 = dma.vmem_to_hbm [thread:$0]  %s792, 384, %s794, [#allocation4], 128, 128, 8
    $region29: #{tpu_custom_call.1} parent=1 // pred_fallthru
      _
    // Predicated region
    $region30: #{tpu_custom_call.1} parent=1 // pred_check
      _
    $region31: #{tpu_custom_call.1} parent=1 // pred_check_branch
      %801 = sbr.rel (0) target = $region33
    $region32: #{tpu_custom_call.1} parent=1 // pred_region
      %803 = dma.done [#allocation4], 384
    $region33: #{tpu_custom_call.1} parent=1 // pred_fallthru
      _
    %804 = vsyncpa [#allocation3], 1
    %805 = vsyncpa [#allocation6], 1
    %806 = vsyncpa [#allocation4], 1

</llo_original>
